<compile_context>
chip_gen: v7x
topology: tpu7x:2x2x1
jax: 0.10.0
libtpu: 0.0.40
codegen_flags: <defaults>
</compile_context>

<pallas_src>
import functools
import math

import jax
import jax.numpy as jnp
from jax.experimental import pallas as pl
from jax.experimental.pallas import tpu as pltpu

_VMEM_LIMIT = 32 * 1024 * 1024     # per-kernel footprint is <= ~10 MiB; keep v7x headroom
_NEG_INF = float("-inf")


def _round_up(x, m):
    return (x + m - 1) // m * m


def _pick_tile(dim):
    """Largest of 256/128 dividing `dim`, else the full dim (single block, no padding)."""
    if dim % 256 == 0:
        return 256
    if dim % 128 == 0:
        return 128
    return dim


def _choose_tm(m, k):
    if m >= 1024 and k <= 2304:
        return 512
    if m >= 512:
        return 256
    if m >= 128:
        return 128
    return m if m % 16 == 0 else _round_up(m, 16)    # bf16 packs 16 rows per vreg


def _cpad(c):
    """Pad a channel count up to a lane-dense multiple of 128."""
    return max(128, _round_up(c, 128))


def _pad_axis(a, axis, new, value=0.0):
    old = a.shape[axis]
    if new == old:
        return a
    pads = [(0, 0)] * a.ndim
    pads[axis] = (0, new - old)
    return jnp.pad(a, pads, constant_values=value)


# ---------------------------------------------------------------------------
# Matmul kernel: o = act((a @ w) * scale + bias [+ residual])
# K is fully resident (single block); grid = (N tiles, M tiles) with M innermost so the
# weight slab stays in VMEM across all M tiles (fetched once per N tile).
# ---------------------------------------------------------------------------
def _mm_kernel(a_ref, w_ref, s_ref, b_ref, *rest, relu, has_res):
    if has_res:
        r_ref, o_ref = rest
    else:
        (o_ref,) = rest
    y = jnp.dot(a_ref[...], w_ref[...], preferred_element_type=jnp.float32)
    y = y * s_ref[...] + b_ref[...]
    if has_res:
        y = y + r_ref[...].astype(jnp.float32)
    if relu:
        y = jnp.maximum(y, 0.0)
    o_ref[...] = y.astype(o_ref.dtype)


@functools.partial(jax.jit, static_argnames=("relu", "out_dtype"))
def matmul_scale_bias(a, w, scale, bias, residual=None, *, relu,
                      out_dtype=jnp.bfloat16):
    """a:(M,K) w:(K,N) scale/bias:(1,N)|(N,) residual:(M,N)|None -> (M,N)."""
    M, K = a.shape
    N = w.shape[1]
    TN = _pick_tile(N)
    TM = _choose_tm(M, K)
    Mp = _round_up(M, TM)

    a_p = a.astype(jnp.bfloat16)
    if Mp != M:
        a_p = jnp.pad(a_p, ((0, Mp - M), (0, 0)))
    w_b = w.astype(jnp.bfloat16)
    s2 = scale.reshape(1, N).astype(jnp.float32)
    b2 = bias.reshape(1, N).astype(jnp.float32)

    has_res = residual is not None
    inputs = [a_p, w_b, s2, b2]
    in_specs = [
        pl.BlockSpec((TM, K), lambda n, m: (m, 0)),
        pl.BlockSpec((K, TN), lambda n, m: (0, n)),     # resident across the inner M axis
        pl.BlockSpec((1, TN), lambda n, m: (0, n)),
        pl.BlockSpec((1, TN), lambda n, m: (0, n)),
    ]
    if has_res:
        r_p = residual.astype(jnp.bfloat16)
        if Mp != M:
            r_p = jnp.pad(r_p, ((0, Mp - M), (0, 0)))
        inputs.append(r_p)
        in_specs.append(pl.BlockSpec((TM, TN), lambda n, m: (m, n)))

    out = pl.pallas_call(
        functools.partial(_mm_kernel, relu=relu, has_res=has_res),
        out_shape=jax.ShapeDtypeStruct((Mp, N), out_dtype),
        grid_spec=pltpu.PrefetchScalarGridSpec(
            num_scalar_prefetch=0,
            grid=(N // TN, Mp // TM),
            in_specs=in_specs,
            out_specs=pl.BlockSpec((TM, TN), lambda n, m: (m, n)),
        ),
        compiler_params=pltpu.CompilerParams(
            dimension_semantics=("parallel", "parallel"),
            vmem_limit_bytes=_VMEM_LIMIT),
    )(*inputs)
    return out[:M] if Mp != M else out


# ---------------------------------------------------------------------------
# Fused 3x3 stride-1 conv + BN + ReLU.
# The padded image is flattened to (Hp*Wp, C); tap (di,dj) is the contiguous row slice at
# offset di*Wp + dj, so the 9 MXU matmuls read straight from the VMEM block with no
# staging copies.  Junk (padded-width) columns are stripped in the per-row store epilogue.
# ---------------------------------------------------------------------------
def _conv3x3_kernel(x_ref, w_ref, s_ref, b_ref, o_ref, *, oh, ow, wp):
    m = oh * wp
    acc = jnp.dot(x_ref[0, pl.ds(0, m), :], w_ref[0],
                  preferred_element_type=jnp.float32)
    for t in range(1, 9):
        di, dj = divmod(t, 3)
        off = di * wp + dj
        acc = acc + jnp.dot(x_ref[0, pl.ds(off, m), :], w_ref[t],
                            preferred_element_type=jnp.float32)
    y = jnp.maximum(acc * s_ref[...] + b_ref[...], 0.0).astype(o_ref.dtype)
    for r in range(oh):                      # strip padded-width junk columns row by row
        o_ref[0, r] = y[r * wp:r * wp + ow, :]


@jax.jit
def conv3x3_s1(x, w9, scale, bias):
    """x:(G,H,W,C) w9:(9,C,Cout) scale/bias:(1,Cout) -> (G,H,W,Cout) bf16."""
    G, H, W, C = x.shape
    Cout = w9.shape[-1]
    OH, OW = H, W
    Wp = W + 2
    # pad H by (1,2): one extra bottom row so the last tap's read for the (discarded)
    # padded-width column never runs out of bounds.
    xp = jnp.pad(x.astype(jnp.bfloat16), ((0, 0), (1, 2), (1, 1), (0, 0)))
    rows = (H + 3) * Wp
    xf = xp.reshape(G, rows, C)
    TCo = _pick_tile(Cout)
    return pl.pallas_call(
        functools.partial(_conv3x3_kernel, oh=OH, ow=OW, wp=Wp),
        out_shape=jax.ShapeDtypeStruct((G, OH, OW, Cout), jnp.bfloat16),
        grid_spec=pltpu.PrefetchScalarGridSpec(
            num_scalar_prefetch=0,
            grid=(G, Cout // TCo),
            in_specs=[
                pl.BlockSpec((1, rows, C), lambda b, co: (b, 0, 0)),
                pl.BlockSpec((9, C, TCo), lambda b, co: (0, 0, co)),
                pl.BlockSpec((1, TCo), lambda b, co: (0, co)),
                pl.BlockSpec((1, TCo), lambda b, co: (0, co)),
            ],
            out_specs=pl.BlockSpec((1, OH, OW, TCo), lambda b, co: (b, 0, 0, co)),
        ),
        compiler_params=pltpu.CompilerParams(
            dimension_semantics=("parallel", "parallel"),
            vmem_limit_bytes=_VMEM_LIMIT),
    )(xf, w9, scale, bias)


# ---------------------------------------------------------------------------
# Max-pool 3x3 stride-2 pad-1, fused.  The padded input is split (by XLA, ~1x input of
# traffic instead of 9 output-sized taps) into 4 space-to-depth phases; each of the 9
# window elements is then a contiguous shifted slice of one phase, combined with chained
# VPU maximums in a single kernel.
# ---------------------------------------------------------------------------
def _maxpool_kernel(pee, peo, poe, poo, o_ref, *, oh, ow, wq):
    m = oh * wq
    terms = ((pee, 0), (pee, 1), (pee, wq), (pee, wq + 1),
             (peo, 0), (peo, wq),
             (poe, 0), (poe, 1),
             (poo, 0))
    acc = terms[0][0][0, pl.ds(0, m), :]
    for ref, off in terms[1:]:
        acc = jnp.maximum(acc, ref[0, pl.ds(off, m), :])
    for r in range(oh):
        o_ref[0, r] = acc[r * wq:r * wq + ow, :]


@jax.jit
def maxpool_3x3_s2(x):
    G, H, W, C = x.shape
    assert H % 2 == 0 and W % 2 == 0
    OH, OW = H // 2, W // 2
    wq = OW + 1
    xp = jnp.pad(x, ((0, 0), (1, 1), (1, 1), (0, 0)), constant_values=_NEG_INF)
    phases = []
    for a in (0, 1):
        for b in (0, 1):
            p = xp[:, a::2, b::2, :]                               # (G, OH+1, OW+1, C)
            p = jnp.pad(p, ((0, 0), (0, 1), (0, 0), (0, 0)),        # safety row for the
                        constant_values=_NEG_INF)                   # discarded junk column
            phases.append(p.reshape(G, (OH + 2) * wq, C))
    rows = (OH + 2) * wq
    return pl.pallas_call(
        functools.partial(_maxpool_kernel, oh=OH, ow=OW, wq=wq),
        out_shape=jax.ShapeDtypeStruct((G, OH, OW, C), x.dtype),
        grid_spec=pltpu.PrefetchScalarGridSpec(
            num_scalar_prefetch=0,
            grid=(G,),
            in_specs=[pl.BlockSpec((1, rows, C), lambda g: (g, 0, 0))] * 4,
            out_specs=pl.BlockSpec((1, OH, OW, C), lambda g: (g, 0, 0, 0)),
        ),
        compiler_params=pltpu.CompilerParams(
            dimension_semantics=("parallel",),
            vmem_limit_bytes=_VMEM_LIMIT),
    )(*phases)


# ---------------------------------------------------------------------------
# Global average pool (tiled over channel blocks) and mixup (tiled over feature blocks)
# ---------------------------------------------------------------------------
def _avgpool_kernel(x_ref, o_ref):
    inv = jnp.float32(1.0 / x_ref.shape[1])
    x = x_ref[...].astype(jnp.float32)
    o_ref[...] = (jnp.sum(x, axis=1) * inv).astype(o_ref.dtype)


@jax.jit
def global_avgpool(x):
    G, H, W, C = x.shape
    HW = H * W
    x3 = x.reshape(G, HW, C)
    TC = _pick_tile(C)
    return pl.pallas_call(
        _avgpool_kernel,
        out_shape=jax.ShapeDtypeStruct((G, C), jnp.float32),
        grid_spec=pltpu.PrefetchScalarGridSpec(
            num_scalar_prefetch=0,
            grid=(C // TC,),
            in_specs=[pl.BlockSpec((G, HW, TC), lambda c: (0, 0, c))],
            out_specs=pl.BlockSpec((G, TC), lambda c: (0, c)),
        ),
        compiler_params=pltpu.CompilerParams(
            dimension_semantics=("parallel",),
            vmem_limit_bytes=_VMEM_LIMIT),
    )(x3)


def _mixup_kernel(x_ref, r_ref, o_ref):
    nmix = x_ref.shape[1]
    acc = x_ref[:, 0, :].astype(jnp.float32) * r_ref[:, 0:1].astype(jnp.float32)
    for k in range(1, nmix):
        acc = acc + x_ref[:, k, :].astype(jnp.float32) * \
            r_ref[:, k:k + 1].astype(jnp.float32)
    o_ref[...] = acc.astype(o_ref.dtype)


@functools.partial(jax.jit, static_argnames=("nmix",))
def mixup_apply(x, ratio, nmix):
    # TODO(synk): exact tl.MixupLayer internals are not public here; we mix `nmix`
    # consecutive batch elements with per-group convex weights (rows of `ratio` sum to 1),
    # shrinking batch B -> B/nmix.
    B = x.shape[0]
    G = B // nmix
    feat_shape = x.shape[1:]
    F = int(math.prod(feat_shape))
    xf = x.reshape(G, nmix, F)
    TF = 512 if F % 512 == 0 else _pick_tile(F)
    out = pl.pallas_call(
        _mixup_kernel,
        out_shape=jax.ShapeDtypeStruct((G, F), x.dtype),
        grid_spec=pltpu.PrefetchScalarGridSpec(
            num_scalar_prefetch=0,
            grid=(F // TF,),
            in_specs=[pl.BlockSpec((G, nmix, TF), lambda f: (0, 0, f)),
                      pl.BlockSpec((G, nmix), lambda f: (0, 0))],
            out_specs=pl.BlockSpec((G, TF), lambda f: (0, f)),
        ),
        compiler_params=pltpu.CompilerParams(
            dimension_semantics=("parallel",),
            vmem_limit_bytes=_VMEM_LIMIT),
    )(xf, ratio.astype(jnp.float32))
    return out.reshape((G,) + feat_shape)


# ---------------------------------------------------------------------------
# im2col glue (only for the 7x7 stem and the three stride-2 3x3 convs)
# ---------------------------------------------------------------------------
def _im2col(x, kh, kw, stride, pad):
    # TODO(synk): the stem / stride-2 3x3 convs still materialize their patch tensor via
    # XLA; all stride-1 3x3 convs (the common case) use the fused conv3x3_s1 kernel.
    B, H, W, C = x.shape
    if pad:
        x = jnp.pad(x, ((0, 0), (pad, pad), (pad, pad), (0, 0)))
    Hp, Wp = H + 2 * pad, W + 2 * pad
    OH = (Hp - kh) // stride + 1
    OW = (Wp - kw) // stride + 1
    taps = []
    for i in range(kh):
        for j in range(kw):
            taps.append(x[:, i:i + stride * OH:stride,
                            j:j + stride * OW:stride, :])
    p = jnp.stack(taps, axis=3)                        # (B, OH, OW, kh*kw, C)
    return p.reshape(B * OH * OW, kh * kw * C), OH, OW


@functools.partial(jax.jit, static_argnames=("kh", "kw", "stride", "pad", "relu"))
def conv_im2col_bn(x, w2d, scale, bias, *, kh, kw, stride, pad, relu):
    B = x.shape[0]
    patches, OH, OW = _im2col(x, kh, kw, stride, pad)
    y = matmul_scale_bias(patches, w2d, scale, bias, relu=relu)
    return y.reshape(B, OH, OW, w2d.shape[1])


# ---------------------------------------------------------------------------
# Synthetic, deterministic ResNet-50 parameters.
# Every sub-128 channel dim (stem out, layer1 planes, d_embed) is zero-padded to 128 so
# all kernel outputs are lane-dense; padded weight rows/cols are zero -> results exact.
# ---------------------------------------------------------------------------
def _conv_init(key, kh, kw, cin, cout):
    fan_in = kh * kw * cin
    return jax.random.normal(key, (kh, kw, cin, cout), jnp.float32) * \
        jnp.float32((2.0 / fan_in) ** 0.5)


def _bn_init(key, c, c_pad=None):
    c_pad = c if c_pad is None else c_pad
    k1, k2 = jax.random.split(key)
    gamma = 1.0 + 0.1 * jax.random.normal(k1, (c,), jnp.float32)
    beta = 0.05 * jax.random.normal(k2, (c,), jnp.float32)
    running_mean = jnp.zeros((c,), jnp.float32)
    running_var = jnp.ones((c,), jnp.float32)
    scale = gamma / jnp.sqrt(running_var + 1e-5)
    bias = beta - running_mean * scale
    scale = jnp.pad(scale, (0, c_pad - c), constant_values=1.0)
    bias = jnp.pad(bias, (0, c_pad - c))
    return scale.reshape(1, c_pad), bias.reshape(1, c_pad)


def make_resnet50_params(key, d_embed):
    cnt = [0]

    def nk():
        cnt[0] += 1
        return jax.random.fold_in(key, cnt[0])

    params = {"d_embed": d_embed}
    c1p = _cpad(64)
    w1 = _conv_init(nk(), 7, 7, 3, 64).reshape(147, 64)
    params["conv1_w"] = _pad_axis(w1, 1, c1p).astype(jnp.bfloat16)
    params["bn1_s"], params["bn1_b"] = _bn_init(nk(), 64, c1p)

    cfg = [(64, 3, 1), (128, 4, 2), (256, 6, 2), (512, 3, 2)]   # ResNet-50
    in_real, in_pad = 64, c1p
    stages = []
    for planes, nblocks, stride in cfg:
        pp = _cpad(planes)
        blocks = []
        for b in range(nblocks):
            s = stride if b == 0 else 1
            out_real, out_pad = planes * 4, _cpad(planes * 4)
            blk = {"stride": s}

            w1_ = _conv_init(nk(), 1, 1, in_real, planes).reshape(in_real, planes)
            blk["w1"] = _pad_axis(_pad_axis(w1_, 0, in_pad), 1, pp).astype(jnp.bfloat16)
            blk["s1"], blk["b1"] = _bn_init(nk(), planes, pp)

            w2_ = _conv_init(nk(), 3, 3, planes, planes)
            w2_ = _pad_axis(_pad_axis(w2_, 2, pp), 3, pp)           # (3,3,pp,pp)
            if s == 1:
                blk["w2"] = w2_.reshape(9, pp, pp).astype(jnp.bfloat16)
            else:
                blk["w2"] = w2_.reshape(9 * pp, pp).astype(jnp.bfloat16)
            blk["s2"], blk["b2"] = _bn_init(nk(), planes, pp)

            w3_ = _conv_init(nk(), 1, 1, planes, out_real).reshape(planes, out_real)
            blk["w3"] = _pad_axis(_pad_axis(w3_, 0, pp), 1, out_pad).astype(jnp.bfloat16)
            blk["s3"], blk["b3"] = _bn_init(nk(), out_real, out_pad)

            if s != 1 or in_real != out_real:
                wd_ = _conv_init(nk(), 1, 1, in_real, out_real).reshape(in_real, out_real)
                blk["wd"] = _pad_axis(_pad_axis(wd_, 0, in_pad), 1, out_pad).astype(jnp.bfloat16)
                blk["sd"], blk["bd"] = _bn_init(nk(), out_real, out_pad)

            blocks.append(blk)
            in_real, in_pad = out_real, out_pad
        stages.append(blocks)
    params["layers"] = stages

    dpad = _cpad(d_embed)
    fcw = jax.random.normal(nk(), (in_real, d_embed), jnp.float32) * \
        jnp.float32((1.0 / in_real) ** 0.5)
    params["fc_w"] = _pad_axis(fcw, 1, dpad).astype(jnp.bfloat16)
    params["fc_s"] = jnp.ones((1, dpad), jnp.float32)
    fcb = 0.05 * jax.random.normal(nk(), (d_embed,), jnp.float32)
    params["fc_b"] = jnp.pad(fcb, (0, dpad - d_embed)).reshape(1, dpad)
    return params


# ---------------------------------------------------------------------------
# Model assembly: [stem] + layer1..4 + [avgpool, flatten, fc], with the mixup layer
# inserted at `mix_level`.
# ---------------------------------------------------------------------------
def _bottleneck(x, p):
    G, H, W, Cin = x.shape
    s = p["stride"]
    planes_pad = p["s1"].shape[-1]
    x2 = x.reshape(G * H * W, Cin)

    out1 = matmul_scale_bias(x2, p["w1"], p["s1"], p["b1"], relu=True)
    out1_4d = out1.reshape(G, H, W, planes_pad)

    if s == 1:
        OH, OW = H, W
        out2_4d = conv3x3_s1(out1_4d, p["w2"], p["s2"], p["b2"])
    else:
        out2_4d = conv_im2col_bn(out1_4d, p["w2"], p["s2"], p["b2"],
                                 kh=3, kw=3, stride=s, pad=1, relu=True)
        _, OH, OW, _ = out2_4d.shape
    out2 = out2_4d.reshape(G * OH * OW, planes_pad)

    if "wd" in p:
        xs = x2 if s == 1 else x[:, ::s, ::s, :].reshape(G * OH * OW, Cin)
        identity = matmul_scale_bias(xs, p["wd"], p["sd"], p["bd"], relu=False)
    else:
        identity = x2

    # residual add + ReLU fused into the last 1x1 conv's epilogue
    out3 = matmul_scale_bias(out2, p["w3"], p["s3"], p["b3"],
                             residual=identity, relu=True)
    return out3.reshape(G, OH, OW, p["s3"].shape[-1])


def _stem(x, params):
    y = conv_im2col_bn(x, params["conv1_w"], params["bn1_s"], params["bn1_b"],
                       kh=7, kw=7, stride=2, pad=3, relu=True)
    return maxpool_3x3_s2(y)


def _stage(x, blocks):
    for blk in blocks:
        x = _bottleneck(x, blk)
    return x


def _head(x, params):
    feats = global_avgpool(x)                          # avgpool + flatten
    y = matmul_scale_bias(feats, params["fc_w"], params["fc_s"], params["fc_b"],
                          relu=False, out_dtype=jnp.float32)
    return y[:, :params["d_embed"]]                    # strip fc lane padding


def resnet_mixup_forward(params, x_nchw, ratio=None, *, nmix=2, mix_level=0,
                         inference=False):
    x = jnp.transpose(x_nchw, (0, 2, 3, 1)).astype(jnp.float32)   # NCHW -> NHWC
    stages = [functools.partial(_stem, params=params)]
    stages += [functools.partial(_stage, blocks=b) for b in params["layers"]]
    stages += [functools.partial(_head, params=params)]
    assert mix_level <= len(stages)
    model = stages[:mix_level] + ["mixup"] + stages[mix_level:]
    for layer in model:
        if layer == "mixup":
            if not inference:                          # skipped entirely at inference
                x = mixup_apply(x, ratio, nmix)
        else:
            x = layer(x)
    return x


if __name__ == "__main__":
    key = jax.random.PRNGKey(0)
    d_embed, nmix, beta, mix_level = 32, 2, 0.4, 0
    B, C, H, W = 4, 3, 32, 32

    kx, kr, kp = jax.random.split(key, 3)
    x = jax.random.normal(kx, (B, C, H, W), jnp.float32)
    lam = jax.random.beta(kr, beta, beta, (B // nmix, 1)).astype(jnp.float32)
    ratio = jnp.concatenate([lam, 1.0 - lam], axis=1)   # (B//nmix, nmix), rows sum to 1

    params = make_resnet50_params(kp, d_embed)
    out = resnet_mixup_forward(params, x, ratio, nmix=nmix,
                               mix_level=mix_level, inference=False)
    out = jax.block_until_ready(out)

    assert out.shape == (B // nmix, d_embed), out.shape
    assert bool(jnp.all(jnp.isfinite(out)))
    print("KERNEL_OK")
</pallas_src>

<mosaic_0001>
module attributes {stable_mosaic.version = 11 : i64} {
  func.func @_mixup_kernel(%arg0: i32, %arg1: memref<2x2x512xf32, #tpu.memory_space<vmem>>, %arg2: memref<2x2xf32, #tpu.memory_space<vmem>>, %arg3: memref<2x512xf32, #tpu.memory_space<vmem>>) attributes {dimension_semantics = [#tpu.dimension_semantics<parallel>], iteration_bounds = array<i64: 6>, scalar_prefetch = 0 : i64, scratch_operands = 0 : i64, tpu.core_type = #tpu.core_type<tc>, window_params = [{transform_indices = @transform_0, window_bounds = array<i64: 2, 2, 512>}, {pipeline_mode = #tpu.pipeline_mode<synchronous>, transform_indices = @transform_1, window_bounds = array<i64: 2, 2>}, {transform_indices = @transform_2, window_bounds = array<i64: 2, 512>}]} {
    %c0 = arith.constant 0 : index
    %c0_0 = arith.constant 0 : index
    %c0_1 = arith.constant 0 : index
    %0 = vector.load %arg1[%c0, %c0_0, %c0_1] : memref<2x2x512xf32, #tpu.memory_space<vmem>>, vector<2x1x512xf32>
    %1 = vector.shape_cast %0 : vector<2x1x512xf32> to vector<2x512xf32>
    %c0_2 = arith.constant 0 : index
    %c0_3 = arith.constant 0 : index
    %2 = vector.load %arg2[%c0_2, %c0_3] : memref<2x2xf32, #tpu.memory_space<vmem>>, vector<2x1xf32>
    %3 = vector.broadcast %2 : vector<2x1xf32> to vector<2x512xf32>
    %4 = arith.mulf %1, %3 : vector<2x512xf32>
    %c0_4 = arith.constant 0 : index
    %c1 = arith.constant 1 : index
    %c0_5 = arith.constant 0 : index
    %5 = vector.load %arg1[%c0_4, %c1, %c0_5] : memref<2x2x512xf32, #tpu.memory_space<vmem>>, vector<2x1x512xf32>
    %6 = vector.shape_cast %5 : vector<2x1x512xf32> to vector<2x512xf32>
    %c0_6 = arith.constant 0 : index
    %c1_7 = arith.constant 1 : index
    %7 = vector.load %arg2[%c0_6, %c1_7] : memref<2x2xf32, #tpu.memory_space<vmem>>, vector<2x1xf32>
    %8 = vector.broadcast %7 : vector<2x1xf32> to vector<2x512xf32>
    %9 = arith.mulf %6, %8 : vector<2x512xf32>
    %10 = arith.addf %4, %9 : vector<2x512xf32>
    %c0_8 = arith.constant 0 : index
    %c0_9 = arith.constant 0 : index
    %11 = vector.load %arg3[%c0_8, %c0_9] : memref<2x512xf32, #tpu.memory_space<vmem>>, vector<2x512xf32>
    tpu.vector_store %arg3[%c0_8, %c0_9], %10 {strides = array<i32>} : memref<2x512xf32, #tpu.memory_space<vmem>>, vector<2x512xf32>,
    return
  }
  func.func @transform_0(%arg0: i32) -> (i32, i32, i32) {
    %c0_i32 = arith.constant 0 : i32
    %c0_i32_0 = arith.constant 0 : i32
    %c0_i32_1 = arith.constant 0 : i32
    return %c0_i32, %c0_i32_0, %arg0 : i32, i32, i32
  }
  func.func @transform_1(%arg0: i32) -> (i32, i32) {
    %c0_i32 = arith.constant 0 : i32
    %c0_i32_0 = arith.constant 0 : i32
    %c0_i32_1 = arith.constant 0 : i32
    return %c0_i32, %c0_i32_0 : i32, i32
  }
  func.func @transform_2(%arg0: i32) -> (i32, i32) {
    %c0_i32 = arith.constant 0 : i32
    %c0_i32_0 = arith.constant 0 : i32
    return %c0_i32, %arg0 : i32, i32
  }
}

</mosaic_0001>

<llo_original>
// kernel: mixup_apply.1
$region0: #{mixup_apply.1}
  #allocation0 [shape = 'u32[]', space=smem, size = 0x4, offset = 0x4, fixed_abs, tag = 'smem constant byte address 0x4 - core index']
  #allocation1 [shape = 'u32[144,128]{1,0:T(1,128)}', space=vmem, size = 0x12000, scoped, tag = 'internal scratch']
  %s0 = inlined_call_operand.vmem [shape: f32[2,2,3072], index: 0, kind: input, shape index: {}]
  %s1 = inlined_call_operand.vmem [shape: f32[2,2], index: 1, kind: input, shape index: {}]
  %s2 = inlined_call_operand.vmem [shape: f32[2,3072], index: 2, kind: output, shape index: {}]
  %s3 = sld [smem:[#allocation0]]
  $region79: #{mixup_apply.1} parent=0
    _
  %s5 = ssub.s32 1, %s3
  %s6 = scalar_select 0, %s5, %s3
  $region1: #{mixup_apply.1} parent=0
    #allocation2 [shape = 'u8[16384]{0}', space=vmem, size = 0x4000, scoped, tag = 'input window, operand 0']
    loop: start=0, step=1, limit=8
    $region2: #{mixup_apply.1} parent=1 // loop_pre_header
      _
    $region3: #{mixup_apply.1} parent=1 // loop_header
      %s8 = sphi 0, %s12
      %p9 = scmp.ge.s32.totalorder %s8, 8
      %s18 = sphi 0, %s20
      %s21 = sphi 0, %s18
      %s22 = sphi 0, %s21
      %s38 = sphi 0, %s22
      %s42 = sphi 0, %s42
      %s44 = sphi 0, %s42
      %s45 = sphi 0, %s44
      %s59 = sphi 0, %s45
      %s65 = sphi 0, %s67
      %s68 = sphi 0, %s65
      %s69 = sphi 0, %s68
      %s85 = sphi 0, %s69
    $region4: #{mixup_apply.1} parent=1 // loop_header_branch
      %11 = sbr.rel (%p9) target = $region8
    $region5: #{mixup_apply.1} parent=1 // loop_body
      %s13 = ssub.s32 %s8, 1
      %s14 = ssub.s32 %s8, 2
      %s15 = sadd.s32 %s8, 1
      %s16 = ssub.s32 %s8, %s15
      %p17 = scmp.eq.s32.totalorder %s16, 0
      %s19 = sadd.s32 %s18, 1
      %s20 = scalar_select %p17, %s18, %s19
      %p23 = pneg %p17
      %p24 = scmp.eq.s32.totalorder %s8, 5
      %p25 = por %p23, %p24
      %p26 = scmp.ne.s32.totalorder %s18, %s21
      %p27 = scmp.eq.s32.totalorder %s8, 0
      %p28 = por %p26, %p27
      %p29 = scmp.ne.s32.totalorder %s18, %s21
      %p30 = scmp.eq.s32.totalorder %s13, 5
      %p31 = por %p29, %p30
      %p32 = scmp.ne.s32.totalorder %s21, %s22
      %p33 = scmp.eq.s32.totalorder %s13, 0
      %p34 = por %p32, %p33
      %p35 = scmp.ne.s32.totalorder %s21, %s22
      %p36 = scmp.eq.s32.totalorder %s14, 5
      %p37 = por %p35, %p36
      %p39 = scmp.ne.s32.totalorder %s22, %s38
      %p40 = scmp.eq.s32.totalorder %s14, 0
      %p41 = por %p39, %p40
      %s43 = sadd.s32 %s42, 1
      %p46 = scmp.eq.s32.totalorder %s8, 5
      %p47 = scmp.ne.s32.totalorder %s42, %s44
      %p48 = scmp.eq.s32.totalorder %s8, 0
      %p49 = por %p47, %p48
      %p50 = scmp.ne.s32.totalorder %s42, %s44
      %p51 = scmp.eq.s32.totalorder %s13, 5
      %p52 = por %p50, %p51
      %p53 = scmp.ne.s32.totalorder %s44, %s45
      %p54 = scmp.eq.s32.totalorder %s13, 0
      %p55 = por %p53, %p54
      %p56 = scmp.ne.s32.totalorder %s44, %s45
      %p57 = scmp.eq.s32.totalorder %s14, 5
      %p58 = por %p56, %p57
      %p60 = scmp.ne.s32.totalorder %s45, %s59
      %p61 = scmp.eq.s32.totalorder %s14, 0
      %p62 = por %p60, %p61
      %s63 = ssub.s32 %s8, %s15
      %p64 = scmp.eq.s32.totalorder %s63, 0
      %s66 = sadd.s32 %s65, 1
      %s67 = scalar_select %p64, %s65, %s66
      %p70 = pneg %p64
      %p71 = scmp.eq.s32.totalorder %s8, 5
      %p72 = por %p70, %p71
      %p73 = scmp.ne.s32.totalorder %s65, %s68
      %p74 = scmp.eq.s32.totalorder %s8, 0
      %p75 = por %p73, %p74
      %p76 = scmp.ne.s32.totalorder %s65, %s68
      %p77 = scmp.eq.s32.totalorder %s13, 5
      %p78 = por %p76, %p77
      %p79 = scmp.ne.s32.totalorder %s68, %s69
      %p80 = scmp.eq.s32.totalorder %s13, 0
      %p81 = por %p79, %p80
      %p82 = scmp.ne.s32.totalorder %s68, %s69
      %p83 = scmp.eq.s32.totalorder %s14, 5
      %p84 = por %p82, %p83
      %p86 = scmp.ne.s32.totalorder %s69, %s85
      %p87 = scmp.eq.s32.totalorder %s14, 0
      %p88 = por %p86, %p87
      %p89 = scmp.le.s32.totalorder 1, %s8
      %p90 = scmp.lt.s32.totalorder %s8, 7
      %p91 = pnand %p89, %p90
      %p92 = pneg %p91
      // Predicated region
      $region9: #{mixup_apply.1} parent=5 // pred_check
        _
      $region10: #{mixup_apply.1} parent=5 // pred_check_branch
        %94 = sbr.rel (%p91) target = $region12
      $region11: #{mixup_apply.1} parent=5 // pred_region
        %s95 = ssub.s32 %s8, 1
        // Predicated region
        $region13: #{mixup_apply.1} parent=11 // pred_check
          %p96 = pneg %p55
        $region14: #{mixup_apply.1} parent=11 // pred_check_branch
          %98 = sbr.rel (%p96) target = $region16
        $region15: #{mixup_apply.1} parent=11 // pred_region
          _
        $region16: #{mixup_apply.1} parent=11 // pred_fallthru
          _
      $region12: #{mixup_apply.1} parent=5 // pred_fallthru
        _
      %p99 = scmp.lt.s32.totalorder %s8, 6
      // Predicated region
      $region17: #{mixup_apply.1} parent=5 // pred_check
        %p100 = pneg %p99
      $region18: #{mixup_apply.1} parent=5 // pred_check_branch
        %102 = sbr.rel (%p100) target = $region20
      $region19: #{mixup_apply.1} parent=5 // pred_region
        // Predicated region
        $region21: #{mixup_apply.1} parent=19 // pred_check
          %p103 = pneg %p28
        $region22: #{mixup_apply.1} parent=19 // pred_check_branch
          %105 = sbr.rel (%p103) target = $region24
        $region23: #{mixup_apply.1} parent=19 // pred_region
          %s106 = sand.u32 %s18, 1
          %s107 = sand.u32 %s18, 1
          %s108 = smul.addr %s107, 16
          %s109 = scalar_lea.vmem [#allocation2], %s108
          %s110 = smul.u32 4, %s8
          %s111 = smul.addr %s110, 2
          %s112 = scalar_lea.vmem %s0, %s111
          // Predicated region
          $region25: #{mixup_apply.1} parent=23 // pred_check
            _
          $region26: #{mixup_apply.1} parent=23 // pred_check_branch
            %114 = sbr.rel (0) target = $region28
          $region27: #{mixup_apply.1} parent=23 // pred_region
            // Predicated region
            $region29: #{mixup_apply.1} parent=27 // pred_check
              _
            $region30: #{mixup_apply.1} parent=27 // pred_check_branch
              %116 = sbr.rel (0) target = $region32
            $region31: #{mixup_apply.1} parent=27 // pred_region
              // Predicated region
              $region44: #{mixup_apply.1} parent=31 // pred_check
                _
              $region45: #{mixup_apply.1} parent=31 // pred_check_branch
                %133 = sbr.rel (0) target = $region47
              $region46: #{mixup_apply.1} parent=31 // pred_region
                loop: start=0, step=1, limit=1
                $region48: #{mixup_apply.1} parent=46 // loop_pre_header
                  _
                $region49: #{mixup_apply.1} parent=46 // loop_header
                  %s135 = sphi 0, %s139
                  %p136 = scmp.ge.s32.totalorder %s135, 1
                  %s140 = sphi %s112, %s112
                  %s141 = sphi %s109, %s109
                $region50: #{mixup_apply.1} parent=46 // loop_header_branch
                  %138 = sbr.rel (%p136) target = $region54
                $region51: #{mixup_apply.1} parent=46 // loop_body
                  %v142 = vld [vmem:[%s140] sm:$0xff]
                  %143 = vst [vmem:[%s141] sm:$0xff] %v142
                  %v144 = vld [vmem:[%s140 + $0x30] sm:$0xff]
                  %145 = vst [vmem:[%s141 + $0x8] sm:$0xff] %v144
                $region52: #{mixup_apply.1} parent=46 // loop_footer
                  %s139 = sadd.s32 1, %s135
                $region53: #{mixup_apply.1} parent=46 // loop_footer_branch
                  %134 = sbr.rel target = $region49
                $region54: #{mixup_apply.1} parent=46 // loop_exit
                  _
              $region47: #{mixup_apply.1} parent=31 // pred_fallthru
                _
              // Predicated region
              $region55: #{mixup_apply.1} parent=31 // pred_check
                _
              $region56: #{mixup_apply.1} parent=31 // pred_check_branch
                %147 = sbr.rel target = $region58
              $region57: #{mixup_apply.1} parent=31 // pred_region
                _
              $region58: #{mixup_apply.1} parent=31 // pred_fallthru
                _
            $region32: #{mixup_apply.1} parent=27 // pred_fallthru
              _
            // Predicated region
            $region33: #{mixup_apply.1} parent=27 // pred_check
              _
            $region34: #{mixup_apply.1} parent=27 // pred_check_branch
              %118 = sbr.rel target = $region36
            $region35: #{mixup_apply.1} parent=27 // pred_region
              loop: start=0, step=1, limit=1
              $region37: #{mixup_apply.1} parent=35 // loop_pre_header
                _
              $region38: #{mixup_apply.1} parent=35 // loop_header
                %s121 = sphi 0, %s125
                %p122 = scmp.ge.s32.totalorder %s121, 1
                %s126 = sphi %s112, %s112
                %s127 = sphi %s109, %s109
              $region39: #{mixup_apply.1} parent=35 // loop_header_branch
                %124 = sbr.rel (%p122) target = $region43
              $region40: #{mixup_apply.1} parent=35 // loop_body
                %v128 = vld [vmem:[%s126] sm:$0xff]
                %129 = vst [vmem:[%s127] sm:$0xff] %v128
                %v130 = vld [vmem:[%s126 + $0x30] sm:$0xff]
                %131 = vst [vmem:[%s127 + $0x8] sm:$0xff] %v130
              $region41: #{mixup_apply.1} parent=35 // loop_footer
                %s125 = sadd.s32 1, %s121
              $region42: #{mixup_apply.1} parent=35 // loop_footer_branch
                %120 = sbr.rel target = $region38
              $region43: #{mixup_apply.1} parent=35 // loop_exit
                _
            $region36: #{mixup_apply.1} parent=27 // pred_fallthru
              _
          $region28: #{mixup_apply.1} parent=23 // pred_fallthru
            _
          %148 = vnop
        $region24: #{mixup_apply.1} parent=19 // pred_fallthru
          _
      $region20: #{mixup_apply.1} parent=5 // pred_fallthru
        _
      %p149 = scmp.le.s32.totalorder 1, %s8
      %p150 = scmp.lt.s32.totalorder %s8, 7
      %p151 = pnand %p149, %p150
      %p152 = pneg %p151
      // Predicated region
      $region59: #{mixup_apply.1} parent=5 // pred_check
        _
      $region60: #{mixup_apply.1} parent=5 // pred_check_branch
        %154 = sbr.rel (%p151) target = $region62
      $region61: #{mixup_apply.1} parent=5 // pred_region
        %s155 = ssub.s32 %s8, 1
        %s156 = sand.u32 %s21, 1
        %s157 = sand.u32 %s21, 1
        %s158 = smul.addr %s157, 16
        %s159 = scalar_lea.vmem [#allocation2], %s158
        // Predicated region
        $region63: #{mixup_apply.1} parent=61 // pred_check
          %p160 = pneg %p34
        $region64: #{mixup_apply.1} parent=61 // pred_check_branch
          %162 = sbr.rel (%p160) target = $region66
        $region65: #{mixup_apply.1} parent=61 // pred_region
          _
        $region66: #{mixup_apply.1} parent=61 // pred_fallthru
          _
        %s163 = sand.u32 %s21, 1
        %s164 = sand.u32 %s21, 1
        %s165 = smul.addr %s164, 16
        %s166 = scalar_lea.vmem [#allocation2], %s165
        %p167 = pneg %p34
        %p168 = pneg %p31
        %p169 = pneg %p55
        %p170 = pneg %p52
        %p171 = pneg %p81
        %p172 = pneg %p78
        %s173 = smul.u32 4, %s13
        %p174 = scmp.lt.s32.totalorder %s173, 23
        %s175 = scalar_select %p174, %s173, 23
        %s176 = smul.addr %s175, 2
        %s177 = scalar_lea.vmem %s2, %s176
        %s178 = smul.u32 4, %s13
        %s179 = smul.u32 4, %s13
        %p180 = scmp.lt.s32.totalorder %s179, 23
        %s181 = scalar_select %p180, %s179, 23
        %s182 = smul.addr %s181, 2
        %s183 = scalar_lea.vmem %s2, %s182
        %s184 = smul.u32 4, %s13
        %v185 = vld [vmem:[%s159] ss:$2 sm:$0xf]
        %s186 = scalar_lea.vmem %s159, 8 [#allocation2]
        %v187 = vld [vmem:[%s186] ss:$2 sm:$0xf]
        %v188 = vld [vmem:[%s1] sm:$0x3]
        %190 = vset.pattern.permute.xlu0 0
        %191 = vperm.xlu0 %190, %v188
        %v192 = vpop.permute.xlu0 %191
        %v193 = vlaneseq
        %v194 = vshrl.u32 %v193, 7
        %v195 = vsub.s32 0, %v194
        %v196 = vrot.slane %v192, %v195
        %v197 = vlaneseq
        %v198 = vshrl.u32 %v197, 7
        %v199 = vsub.s32 1, %v198
        %v200 = vrot.slane %v192, %v199
        %v203 = vmul.f32 %v185, %v196
        %v204 = vmul.f32 %v187, %v200
        %s205 = scalar_lea.vmem %s159, 1 [#allocation2]
        %v206 = vld [vmem:[%s205] ss:$2 sm:$0xf]
        %s207 = scalar_lea.vmem %s159, 9 [#allocation2]
        %v208 = vld [vmem:[%s207] ss:$2 sm:$0xf]
        %209 = vset.pattern.permute.xlu0 1
        %210 = vperm.xlu0 %209, %v188
        %v211 = vpop.permute.xlu0 %210
        %v212 = vlaneseq
        %v213 = vshrl.u32 %v212, 7
        %v214 = vsub.s32 0, %v213
        %v215 = vrot.slane %v211, %v214
        %v216 = vlaneseq
        %v217 = vshrl.u32 %v216, 7
        %v218 = vsub.s32 1, %v217
        %v219 = vrot.slane %v211, %v218
        %v222 = vmul.f32 %v206, %v215
        %v223 = vmul.f32 %v208, %v219
        %v224 = vadd.f32 %v203, %v222
        %v225 = vadd.f32 %v204, %v223
        %v228 = vcombine.low %v224, %v225
        %v230 = vunpack.c.l.s4 1935823168
        %v231 = vunpack.c.0.s8 %v230
        %v232 = vlaneseq
        %v233 = vshrl.u32 %v232, 7
        %v234 = vsub.s32 %v231, %v233
        %v235 = vrot.slane %v228, %v234
        %237 = vst [vmem:[%s183] sm:$0xff] %v235
        %s238 = smul.u32 4, %s13
        %p239 = scmp.lt.s32.totalorder %s238, 23
        %s240 = scalar_select %p239, %s238, 23
        %s241 = smul.addr %s240, 2
        %s242 = scalar_lea.vmem %s2, %s241
        // Predicated region
        $region67: #{mixup_apply.1} parent=61 // pred_check
          %p243 = pneg %p78
        $region68: #{mixup_apply.1} parent=61 // pred_check_branch
          %245 = sbr.rel (%p243) target = $region70
        $region69: #{mixup_apply.1} parent=61 // pred_region
          %s246 = smul.u32 4, %s13
        $region70: #{mixup_apply.1} parent=61 // pred_fallthru
          _
      $region62: #{mixup_apply.1} parent=5 // pred_fallthru
        _
      %p247 = scmp.le.s32.totalorder 2, %s8
      // Predicated region
      $region71: #{mixup_apply.1} parent=5 // pred_check
        %p248 = pneg %p247
      $region72: #{mixup_apply.1} parent=5 // pred_check_branch
        %250 = sbr.rel (%p248) target = $region74
      $region73: #{mixup_apply.1} parent=5 // pred_region
        %s251 = ssub.s32 %s8, 2
        // Predicated region
        $region75: #{mixup_apply.1} parent=73 // pred_check
          %p252 = pneg %p84
        $region76: #{mixup_apply.1} parent=73 // pred_check_branch
          %254 = sbr.rel (%p252) target = $region78
        $region77: #{mixup_apply.1} parent=73 // pred_region
          %s255 = smul.u32 4, %s14
          %p256 = scmp.lt.s32.totalorder %s255, 23
          %s257 = scalar_select %p256, %s255, 23
          %s258 = smul.addr %s257, 2
          %s259 = scalar_lea.vmem %s2, %s258
        $region78: #{mixup_apply.1} parent=73 // pred_fallthru
          _
      $region74: #{mixup_apply.1} parent=5 // pred_fallthru
        _
    $region6: #{mixup_apply.1} parent=1 // loop_footer
      %s12 = sadd.s32 1, %s8
    $region7: #{mixup_apply.1} parent=1 // loop_footer_branch
      %7 = sbr.rel target = $region3
    $region8: #{mixup_apply.1} parent=1 // loop_exit
      _

</llo_original>
